<compile_context>
chip_gen: v5e
topology: v5e:2x2
jax: 0.10.0
libtpu: 0.0.40
codegen_flags: <defaults>
</compile_context>

<pallas_src>
import functools
import math

import jax
import jax.numpy as jnp
from jax.experimental import pallas as pl
from jax.experimental.pallas import tpu as pltpu

LN_EPS = 1e-5   # nn.LayerNorm default


# ---------------------------------------------------------------------------
# VMEM-aware tiling helpers
# ---------------------------------------------------------------------------
def _vmem_capacity_bytes():
    try:
        return int(pltpu.get_tpu_info().vmem_capacity_bytes)
    except Exception:
        return 64 << 20          # v7x per-TC VMEM (smallest generation) as a safe fallback


def _pick_row_tile(n_rows, d, g6, budget_bytes):
    """Rows per grid step for the projection kernel (kernel 1)."""
    # Constant-index weight/bias BlockSpecs are still double-buffered by the pipeline,
    # so count them twice (review fix).  W_cat is bf16, biases/gamma/beta f32.
    weight_bytes = 2 * (d * g6 * 2 + g6 * 4 + 2 * d * 4)
    per_row = 2 * (d * 4) + 2 * (2 * (g6 // 2) * 2)   # dbl-buf f32 input + 2 dbl-buf bf16 outputs
    tn = (budget_bytes - weight_bytes) // max(per_row, 1)
    tn = int(max(8, min(tn, 2048)))
    if tn >= n_rows:
        return n_rows                                  # full extent (always legal)
    return max(8, (tn // 8) * 8)                       # multiple of 8 sublanes


def _pick_time_chunk(t, b, h, budget_bytes, max_unroll=32):
    """Timesteps per grid step for the recurrence kernel (kernel 2)."""
    g3 = 3 * h
    resident = 2 * ((2 * h) * (2 * g3) * 4 + (2 * g3) * 4) + b * 2 * h * 4
    per_t = 2 * 2 * b * g3 * 2 + 2 * 2 * b * h * 4     # dbl-buf bf16 inputs + dbl-buf f32 outputs, both dirs
    tc = (budget_bytes - resident) // max(per_t, 1)
    return int(max(1, min(max_unroll, t, tc)))


# ---------------------------------------------------------------------------
# Kernel 1: LayerNorm + exact-erf GELU + fused per-direction input projections
#   res = gelu(ln(x)) @ [W_ih_f^T | W_ih_b^T] + [b_ih_f | b_ih_b]   (one bf16 MXU pass)
#   out_f = res[:, :3H], out_b = res[:, 3H:]   (emitted as bf16 intermediates)
# ---------------------------------------------------------------------------
def ln_gelu_proj_kernel(x_ref, gamma_ref, beta_ref, w_ref, b_ref, of_ref, ob_ref):
    g3 = of_ref.shape[-1]
    x = x_ref[...].astype(jnp.float32)                          # (TN, D)
    mu = jnp.mean(x, axis=-1, keepdims=True)
    var = jnp.mean((x - mu) ** 2, axis=-1, keepdims=True)
    xn = (x - mu) * jax.lax.rsqrt(var + LN_EPS)
    y = xn * gamma_ref[...] + beta_ref[...]
    # exact GELU (erf), matching torch.nn.functional.gelu default
    g = 0.5 * y * (1.0 + jax.lax.erf(y * (1.0 / math.sqrt(2.0))))
    res = jnp.dot(g.astype(jnp.bfloat16), w_ref[...],           # bf16 x bf16 -> f32 acc
                  preferred_element_type=jnp.float32) + b_ref[...]
    of_ref[...] = res[:, :g3].astype(of_ref.dtype)
    ob_ref[...] = res[:, g3:].astype(ob_ref.dtype)


def ln_gelu_proj(x2d, gamma, beta, w_cat, b_cat, budget, vmem_limit):
    n, d = x2d.shape
    g6 = w_cat.shape[1]
    g3 = g6 // 2
    tn = _pick_row_tile(n, d, g6, budget)
    grid = (-(-n // tn),)

    rows = lambda i: (i, 0)
    const = lambda i: (0, 0)

    out_f, out_b = pl.pallas_call(
        ln_gelu_proj_kernel,
        out_shape=(jax.ShapeDtypeStruct((n, g3), jnp.bfloat16),
                   jax.ShapeDtypeStruct((n, g3), jnp.bfloat16)),
        grid_spec=pltpu.PrefetchScalarGridSpec(
            num_scalar_prefetch=0,
            grid=grid,
            in_specs=[
                pl.BlockSpec((tn, d), rows),
                pl.BlockSpec((1, d), const),
                pl.BlockSpec((1, d), const),
                pl.BlockSpec((d, g6), const),     # resident bf16 W_cat
                pl.BlockSpec((1, g6), const),
            ],
            out_specs=[
                pl.BlockSpec((tn, g3), rows),
                pl.BlockSpec((tn, g3), rows),
            ],
        ),
        compiler_params=pltpu.CompilerParams(
            dimension_semantics=("parallel",),      # row chunks are independent
            vmem_limit_bytes=vmem_limit),
    )(x2d, gamma.reshape(1, d), beta.reshape(1, d), w_cat, b_cat)
    return out_f, out_b


# ---------------------------------------------------------------------------
# Kernel 2: fused bidirectional GRU recurrence, time-major + time-chunked.
#   Grid step g processes forward time chunk g and backward time chunk C-1-g.
#   h_cat = [h_f | h_b] (B, 2H) lives in VMEM scratch across grid steps; one
#   block-diagonal matmul (B,2H)@(2H,6H) per timestep serves both directions.
# ---------------------------------------------------------------------------
def gru_fused_kernel(xpf_ref, xpb_ref, whh_ref, bhh_ref, of_ref, ob_ref, h_sc,
                     *, n_chunks, t_real):
    tc = xpf_ref.shape[0]
    h_dim = of_ref.shape[-1]
    g3 = 3 * h_dim
    step_id = pl.program_id(0)

    @pl.when(step_id == 0)
    def _():
        h_sc[...] = jnp.zeros_like(h_sc)

    h_cat = h_sc[...]                                   # (B, 2H) f32
    whh = whh_ref[...]                                  # (2H, 6H) block-diag, resident
    bhh = bhh_ref[...]                                  # (1, 6H)
    t_rev_base = (n_chunks - 1 - step_id) * tc          # global time of local j=0 in backward chunk
    mask_padding = (n_chunks * tc != t_real)            # static: only emit masks when T was padded

    def gate(gx, gh, h_prev):
        r = jax.nn.sigmoid(gx[:, :h_dim] + gh[:, :h_dim])
        z = jax.nn.sigmoid(gx[:, h_dim:2 * h_dim] + gh[:, h_dim:2 * h_dim])
        n = jnp.tanh(gx[:, 2 * h_dim:] + r * gh[:, 2 * h_dim:])
        return (1.0 - z) * n + z * h_prev

    # Bounded static unroll (Tc <= 32); per-step slabs are read from the refs so only
    # h_cat is carried in vregs across iterations.
    for i in range(tc):
        j = tc - 1 - i
        gx_f = xpf_ref[i].astype(jnp.float32)           # (B, 3H) dense slab load
        gx_b = xpb_ref[j].astype(jnp.float32)
        gh = jnp.dot(h_cat, whh, preferred_element_type=jnp.float32) + bhh   # one fused MXU op
        h_f = h_cat[:, :h_dim]
        h_b = h_cat[:, h_dim:]
        h_f_new = gate(gx_f, gh[:, :g3], h_f)
        h_b_new = gate(gx_b, gh[:, g3:], h_b)
        if mask_padding:
            # padded timesteps (t >= t_real) must not perturb the backward carry
            h_b_new = jnp.where(t_rev_base + j < t_real, h_b_new, h_b)
        of_ref[i] = h_f_new.astype(of_ref.dtype)        # dense (B, H) slab store
        ob_ref[j] = h_b_new.astype(ob_ref.dtype)
        h_cat = jnp.concatenate([h_f_new, h_b_new], axis=-1)

    h_sc[...] = h_cat


def gru_bidirectional(xp_f, xp_b, whh_blk, bhh_cat, hidden, tc, t_real, vmem_limit):
    t_pad, b, g3 = xp_f.shape
    c = t_pad // tc
    h2 = 2 * hidden
    g6 = 2 * g3

    fwd = lambda g: (g, 0, 0)
    rev = lambda g: (c - 1 - g, 0, 0)                   # backward chunks, no jnp.flip passes
    const = lambda g: (0, 0)

    kernel = functools.partial(gru_fused_kernel, n_chunks=c, t_real=t_real)

    out_f, out_b = pl.pallas_call(
        kernel,
        out_shape=(jax.ShapeDtypeStruct((t_pad, b, hidden), jnp.float32),
                   jax.ShapeDtypeStruct((t_pad, b, hidden), jnp.float32)),
        grid_spec=pltpu.PrefetchScalarGridSpec(
            num_scalar_prefetch=0,
            grid=(c,),
            in_specs=[
                pl.BlockSpec((tc, b, g3), fwd),         # forward chunk g
                pl.BlockSpec((tc, b, g3), rev),         # backward chunk C-1-g
                pl.BlockSpec((h2, g6), const),          # resident block-diag W_hh
                pl.BlockSpec((1, g6), const),
            ],
            out_specs=[
                pl.BlockSpec((tc, b, hidden), fwd),
                pl.BlockSpec((tc, b, hidden), rev),
            ],
            scratch_shapes=[pltpu.VMEM((b, h2), jnp.float32)],
        ),
        compiler_params=pltpu.CompilerParams(
            dimension_semantics=("arbitrary",),         # sequential carry over time chunks
            vmem_limit_bytes=vmem_limit),
    )(xp_f, xp_b, whh_blk, bhh_cat)
    return out_f, out_b


# ---------------------------------------------------------------------------
# Full forward
# ---------------------------------------------------------------------------
def bidirectional_gru_forward(x, params):
    b, t, d = x.shape
    h = params["hidden"]
    g3 = 3 * h

    vmem_cap = _vmem_capacity_bytes()
    vmem_limit = (vmem_cap * 3) // 4
    budget = (vmem_limit * 3) // 4

    # time-major once (outside the serial recurrence)
    x_t = jnp.transpose(x, (1, 0, 2))                   # (T, B, D)
    tc = _pick_time_chunk(t, b, h, budget)
    c = -(-t // tc)
    t_pad = c * tc
    if t_pad != t:
        x_t = jnp.pad(x_t, ((0, t_pad - t), (0, 0), (0, 0)))

    # fused bf16 input-projection weights (b_ih folded into the projection)
    w_cat = jnp.concatenate([params["w_ih_f"].T, params["w_ih_b"].T],
                            axis=1).astype(jnp.bfloat16)              # (D, 6H)
    b_cat = jnp.concatenate([params["b_ih_f"], params["b_ih_b"]]
                            ).reshape(1, 2 * g3).astype(jnp.float32)

    xpf2d, xpb2d = ln_gelu_proj(x_t.reshape(t_pad * b, d), params["gamma"], params["beta"],
                                w_cat, b_cat, budget, vmem_limit)
    xp_f = xpf2d.reshape(t_pad, b, g3)                  # free row-major reshapes (time-major)
    xp_b = xpb2d.reshape(t_pad, b, g3)

    # block-diagonal recurrent weight: one MXU matmul per timestep serves both directions
    whh_blk = (jnp.zeros((2 * h, 2 * g3), jnp.float32)
               .at[:h, :g3].set(params["w_hh_f"].T)
               .at[h:, g3:].set(params["w_hh_b"].T))
    bhh_cat = jnp.concatenate([params["b_hh_f"], params["b_hh_b"]]
                              ).reshape(1, 2 * g3).astype(jnp.float32)

    out_f_tm, out_b_tm = gru_bidirectional(xp_f, xp_b, whh_blk, bhh_cat,
                                           h, tc, t, vmem_limit)

    out_tm = jnp.concatenate([out_f_tm[:t], out_b_tm[:t]], axis=-1)    # (T, B, 2H)
    # Dropout: identity in eval mode (inference semantics).
    return jnp.transpose(out_tm, (1, 0, 2))             # (B, T, 2H)


# ---------------------------------------------------------------------------
# Params + pure-JAX reference (for self-check)
# ---------------------------------------------------------------------------
def init_params(key, rnn_dim, hidden):
    ks = jax.random.split(key, 8)
    bound = 1.0 / math.sqrt(hidden)
    u = lambda k, shp: jax.random.uniform(k, shp, jnp.float32, -bound, bound)
    return {
        "hidden": hidden,
        "gamma": jnp.ones((rnn_dim,), jnp.float32),
        "beta": jnp.zeros((rnn_dim,), jnp.float32),
        # gate order (r, z, n), matching torch nn.GRU weight layout
        "w_ih_f": u(ks[0], (3 * hidden, rnn_dim)),
        "w_hh_f": u(ks[1], (3 * hidden, hidden)),
        "b_ih_f": u(ks[2], (3 * hidden,)),
        "b_hh_f": u(ks[3], (3 * hidden,)),
        "w_ih_b": u(ks[4], (3 * hidden, rnn_dim)),
        "w_hh_b": u(ks[5], (3 * hidden, hidden)),
        "b_ih_b": u(ks[6], (3 * hidden,)),
        "b_hh_b": u(ks[7], (3 * hidden,)),
    }


def _ref_forward(x, params):
    B, T, D = x.shape
    H = params["hidden"]
    mu = x.mean(-1, keepdims=True)
    var = ((x - mu) ** 2).mean(-1, keepdims=True)
    y = (x - mu) / jnp.sqrt(var + LN_EPS) * params["gamma"] + params["beta"]
    g = 0.5 * y * (1.0 + jax.lax.erf(y / jnp.sqrt(2.0)))

    def run(reverse, w_ih, w_hh, b_ih, b_hh):
        xs = g[:, ::-1] if reverse else g

        def step(h, xt):
            gx = xt @ w_ih.T + b_ih
            gh = h @ w_hh.T + b_hh
            r = jax.nn.sigmoid(gx[:, :H] + gh[:, :H])
            z = jax.nn.sigmoid(gx[:, H:2 * H] + gh[:, H:2 * H])
            n = jnp.tanh(gx[:, 2 * H:] + r * gh[:, 2 * H:])
            h = (1.0 - z) * n + z * h
            return h, h

        h0 = jnp.zeros((B, H), jnp.float32)
        _, hs = jax.lax.scan(step, h0, jnp.swapaxes(xs, 0, 1))
        hs = jnp.swapaxes(hs, 0, 1)                      # (B, T, H)
        return hs[:, ::-1] if reverse else hs

    of = run(False, params["w_ih_f"], params["w_hh_f"], params["b_ih_f"], params["b_hh_f"])
    ob = run(True, params["w_ih_b"], params["w_hh_b"], params["b_ih_b"], params["b_hh_b"])
    return jnp.concatenate([of, ob], axis=-1)


if __name__ == "__main__":
    B, T, D, H = 2, 8, 64, 32      # batch, seq, rnn_dim, hidden_size

    key = jax.random.PRNGKey(0)
    k_params, k_x = jax.random.split(key)
    params = init_params(k_params, D, H)
    x = jax.random.normal(k_x, (B, T, D), dtype=jnp.float32)

    out = jax.block_until_ready(bidirectional_gru_forward(x, params))
    assert out.shape == (B, T, 2 * H)
    assert bool(jnp.all(jnp.isfinite(out)))

    ref = _ref_forward(x, params)
    max_err = float(jnp.max(jnp.abs(out - ref)))
    assert max_err < 5e-2, f"mismatch vs reference: {max_err}"

    print("KERNEL_OK")
</pallas_src>

<mosaic_0001>
module attributes {stable_mosaic.version = 11 : i64} {
  func.func @ln_gelu_proj_kernel(%arg0: i32, %arg1: memref<16x64xf32, #tpu.memory_space<vmem>>, %arg2: memref<1x64xf32, #tpu.memory_space<vmem>>, %arg3: memref<1x64xf32, #tpu.memory_space<vmem>>, %arg4: memref<64x192xbf16, #tpu.memory_space<vmem>>, %arg5: memref<1x192xf32, #tpu.memory_space<vmem>>, %arg6: memref<16x96xbf16, #tpu.memory_space<vmem>>, %arg7: memref<16x96xbf16, #tpu.memory_space<vmem>>) attributes {dimension_semantics = [#tpu.dimension_semantics<parallel>], iteration_bounds = array<i64: 1>, scalar_prefetch = 0 : i64, scratch_operands = 0 : i64, tpu.core_type = #tpu.core_type<tc>, window_params = [{transform_indices = @transform_0, window_bounds = array<i64: 16, 64>}, {pipeline_mode = #tpu.pipeline_mode<synchronous>, transform_indices = @transform_1, window_bounds = array<i64: 1, 64>}, {pipeline_mode = #tpu.pipeline_mode<synchronous>, transform_indices = @transform_2, window_bounds = array<i64: 1, 64>}, {pipeline_mode = #tpu.pipeline_mode<synchronous>, transform_indices = @transform_3, window_bounds = array<i64: 64, 192>}, {pipeline_mode = #tpu.pipeline_mode<synchronous>, transform_indices = @transform_4, window_bounds = array<i64: 1, 192>}, {transform_indices = @transform_5, window_bounds = array<i64: 16, 96>}, {transform_indices = @transform_6, window_bounds = array<i64: 16, 96>}]} {
    %c0 = arith.constant 0 : index
    %c0_0 = arith.constant 0 : index
    %0 = vector.load %arg1[%c0, %c0_0] : memref<16x64xf32, #tpu.memory_space<vmem>>, vector<16x64xf32>
    %cst = arith.constant dense<0.000000e+00> : vector<16xf32>
    %1 = vector.multi_reduction <add>, %0, %cst [1] : vector<16x64xf32> to vector<16xf32>
    %2 = vector.shape_cast %1 : vector<16xf32> to vector<16x1xf32>
    %cst_1 = arith.constant 6.400000e+01 : f32
    %3 = vector.broadcast %cst_1 : f32 to vector<16x1xf32>
    %4 = arith.divf %2, %3 : vector<16x1xf32>
    %5 = vector.broadcast %4 : vector<16x1xf32> to vector<16x64xf32>
    %6 = arith.subf %0, %5 : vector<16x64xf32>
    %7 = arith.mulf %6, %6 : vector<16x64xf32>
    %cst_2 = arith.constant dense<0.000000e+00> : vector<16xf32>
    %8 = vector.multi_reduction <add>, %7, %cst_2 [1] : vector<16x64xf32> to vector<16xf32>
    %9 = vector.shape_cast %8 : vector<16xf32> to vector<16x1xf32>
    %cst_3 = arith.constant 6.400000e+01 : f32
    %10 = vector.broadcast %cst_3 : f32 to vector<16x1xf32>
    %11 = arith.divf %9, %10 : vector<16x1xf32>
    %12 = vector.broadcast %4 : vector<16x1xf32> to vector<16x64xf32>
    %13 = arith.subf %0, %12 : vector<16x64xf32>
    %cst_4 = arith.constant 9.99999974E-6 : f32
    %14 = vector.broadcast %cst_4 : f32 to vector<16x1xf32>
    %15 = arith.addf %11, %14 : vector<16x1xf32>
    %16 = math.rsqrt %15 : vector<16x1xf32>
    %17 = vector.broadcast %16 : vector<16x1xf32> to vector<16x64xf32>
    %18 = arith.mulf %13, %17 : vector<16x64xf32>
    %c0_5 = arith.constant 0 : index
    %c0_6 = arith.constant 0 : index
    %19 = vector.load %arg2[%c0_5, %c0_6] : memref<1x64xf32, #tpu.memory_space<vmem>>, vector<1x64xf32>
    %20 = vector.broadcast %19 : vector<1x64xf32> to vector<16x64xf32>
    %21 = arith.mulf %18, %20 : vector<16x64xf32>
    %c0_7 = arith.constant 0 : index
    %c0_8 = arith.constant 0 : index
    %22 = vector.load %arg3[%c0_7, %c0_8] : memref<1x64xf32, #tpu.memory_space<vmem>>, vector<1x64xf32>
    %23 = vector.broadcast %22 : vector<1x64xf32> to vector<16x64xf32>
    %24 = arith.addf %21, %23 : vector<16x64xf32>
    %cst_9 = arith.constant 5.000000e-01 : f32
    %25 = vector.broadcast %cst_9 : f32 to vector<16x64xf32>
    %26 = arith.mulf %25, %24 : vector<16x64xf32>
    %cst_10 = arith.constant 0.707106769 : f32
    %27 = vector.broadcast %cst_10 : f32 to vector<16x64xf32>
    %28 = arith.mulf %24, %27 : vector<16x64xf32>
    %29 = math.erf %28 : vector<16x64xf32>
    %cst_11 = arith.constant 1.000000e+00 : f32
    %30 = vector.broadcast %cst_11 : f32 to vector<16x64xf32>
    %31 = arith.addf %30, %29 : vector<16x64xf32>
    %32 = arith.mulf %26, %31 : vector<16x64xf32>
    %33 = arith.truncf %32 : vector<16x64xf32> to vector<16x64xbf16>
    %c0_12 = arith.constant 0 : index
    %c0_13 = arith.constant 0 : index
    %34 = vector.load %arg4[%c0_12, %c0_13] : memref<64x192xbf16, #tpu.memory_space<vmem>>, vector<64x192xbf16>
    %cst_14 = arith.constant dense<0.000000e+00> : vector<16x192xf32>
    %35 = tpu.matmul %33, %34, %cst_14 {dimension_numbers = #tpu.dot_dimension_numbers<[1], [0], [0], [1], [0, 0, 1, 1], [], []>} : vector<16x64xbf16>, vector<64x192xbf16>, vector<16x192xf32> -> vector<16x192xf32>
    %c0_15 = arith.constant 0 : index
    %c0_16 = arith.constant 0 : index
    %36 = vector.load %arg5[%c0_15, %c0_16] : memref<1x192xf32, #tpu.memory_space<vmem>>, vector<1x192xf32>
    %37 = vector.broadcast %36 : vector<1x192xf32> to vector<16x192xf32>
    %38 = arith.addf %35, %37 : vector<16x192xf32>
    %39 = vector.extract_strided_slice %38 {offsets = [0, 0], sizes = [16, 96], strides = [1, 1]} : vector<16x192xf32> to vector<16x96xf32>
    %40 = arith.truncf %39 : vector<16x96xf32> to vector<16x96xbf16>
    %c0_17 = arith.constant 0 : index
    %c0_18 = arith.constant 0 : index
    %41 = vector.load %arg6[%c0_17, %c0_18] : memref<16x96xbf16, #tpu.memory_space<vmem>>, vector<16x96xbf16>
    tpu.vector_store %arg6[%c0_17, %c0_18], %40 {strides = array<i32>} : memref<16x96xbf16, #tpu.memory_space<vmem>>, vector<16x96xbf16>,
    %42 = vector.extract_strided_slice %38 {offsets = [0, 96], sizes = [16, 96], strides = [1, 1]} : vector<16x192xf32> to vector<16x96xf32>
    %43 = arith.truncf %42 : vector<16x96xf32> to vector<16x96xbf16>
    %c0_19 = arith.constant 0 : index
    %c0_20 = arith.constant 0 : index
    %44 = vector.load %arg7[%c0_19, %c0_20] : memref<16x96xbf16, #tpu.memory_space<vmem>>, vector<16x96xbf16>
    tpu.vector_store %arg7[%c0_19, %c0_20], %43 {strides = array<i32>} : memref<16x96xbf16, #tpu.memory_space<vmem>>, vector<16x96xbf16>,
    return
  }
  func.func @transform_0(%arg0: i32) -> (i32, i32) {
    %c0_i32 = arith.constant 0 : i32
    %c0_i32_0 = arith.constant 0 : i32
    return %arg0, %c0_i32 : i32, i32
  }
  func.func @transform_1(%arg0: i32) -> (i32, i32) {
    %c0_i32 = arith.constant 0 : i32
    %c0_i32_0 = arith.constant 0 : i32
    %c0_i32_1 = arith.constant 0 : i32
    return %c0_i32, %c0_i32_0 : i32, i32
  }
  func.func @transform_2(%arg0: i32) -> (i32, i32) {
    %c0_i32 = arith.constant 0 : i32
    %c0_i32_0 = arith.constant 0 : i32
    %c0_i32_1 = arith.constant 0 : i32
    return %c0_i32, %c0_i32_0 : i32, i32
  }
  func.func @transform_3(%arg0: i32) -> (i32, i32) {
    %c0_i32 = arith.constant 0 : i32
    %c0_i32_0 = arith.constant 0 : i32
    %c0_i32_1 = arith.constant 0 : i32
    return %c0_i32, %c0_i32_0 : i32, i32
  }
  func.func @transform_4(%arg0: i32) -> (i32, i32) {
    %c0_i32 = arith.constant 0 : i32
    %c0_i32_0 = arith.constant 0 : i32
    %c0_i32_1 = arith.constant 0 : i32
    return %c0_i32, %c0_i32_0 : i32, i32
  }
  func.func @transform_5(%arg0: i32) -> (i32, i32) {
    %c0_i32 = arith.constant 0 : i32
    %c0_i32_0 = arith.constant 0 : i32
    return %arg0, %c0_i32 : i32, i32
  }
  func.func @transform_6(%arg0: i32) -> (i32, i32) {
    %c0_i32 = arith.constant 0 : i32
    %c0_i32_0 = arith.constant 0 : i32
    return %arg0, %c0_i32 : i32, i32
  }
}

</mosaic_0001>

<llo_original>
// kernel: tpu_custom_call.1
$region0: #{tpu_custom_call.1}
  #allocation0 [shape = 'u32[]', space=smem, size = 0x4, offset = 0x4, fixed_abs, tag = 'smem constant byte address 0x4 - core index']
  #allocation1 [shape = 'u32[72,128]{1,0:T(1,128)}', space=vmem, size = 0x9000, scoped, tag = 'internal scratch']
  %s0 = inlined_call_operand.hbm [shape: f32[16,64], index: 0, kind: input, shape index: {}]
  %s1 = inlined_call_operand.hbm [shape: f32[1,64], index: 1, kind: input, shape index: {}]
  %s2 = inlined_call_operand.vmem [shape: f32[1,64], index: 2, kind: input, shape index: {}]
  %s3 = inlined_call_operand.hbm [shape: bf16[64,192], index: 3, kind: input, shape index: {}]
  %s4 = inlined_call_operand.vmem [shape: f32[1,192], index: 4, kind: input, shape index: {}]
  %s5 = inlined_call_operand.hbm [shape: bf16[16,96], index: 5, kind: output, shape index: {0}]
  %s6 = inlined_call_operand.hbm [shape: bf16[16,96], index: 6, kind: output, shape index: {1}]
  %7 = xla_tuple %s5, %s6
  %s8 = sld [smem:[#allocation0]]
  $region50: #{tpu_custom_call.1} parent=0
    _
  %s10 = ssub.s32 1, %s8
  %s11 = scalar_select 0, %s10, %s8
  $region1: #{tpu_custom_call.1} parent=0
    #allocation2 [shape = 'u8[8192]{0}', space=vmem, size = 0x2000, scoped, tag = 'input window, operand 0, single buffered']
    #allocation3 [shape = 's32[1]{0}', space=sflag, size = 0x4, scoped, tag = 'scoped memory for tpu_custom_call.1']
    #allocation4 [shape = 's32[1]{0}', space=sflag, size = 0x4, scoped, tag = 'scoped memory for tpu_custom_call.1']
    #allocation5 [shape = 'u8[512]{0}', space=vmem, size = 0x400, scoped, tag = 'input window, operand 1, single buffered']
    #allocation6 [shape = 's32[1]{0}', space=sflag, size = 0x4, scoped, tag = 'scoped memory for tpu_custom_call.1']
    #allocation7 [shape = 'u8[32768]{0}', space=vmem, size = 0x8000, scoped, tag = 'input window, operand 3, single buffered']
    #allocation8 [shape = 'u8[4096]{0}', space=vmem, size = 0x1000, scoped, tag = 'output window, operand 0, single buffered']
    #allocation9 [shape = 'u8[4096]{0}', space=vmem, size = 0x1000, scoped, tag = 'output window, operand 1, single buffered']
    #allocation10 [shape = 's32[1]{0}', space=sflag, size = 0x4, scoped, tag = 'scoped memory for tpu_custom_call.1']
    %12 = vsyncpa [#allocation3], 0
    %13 = vsyncpa [#allocation6], 0
    %14 = vsyncpa [#allocation4], 0
    %15 = vsyncpa [#allocation10], 0
    // Predicated region
    $region2: #{tpu_custom_call.1} parent=1 // pred_check
      _
    $region3: #{tpu_custom_call.1} parent=1 // pred_check_branch
      %17 = sbr.rel (0) target = $region5
    $region4: #{tpu_custom_call.1} parent=1 // pred_region
      %19 = vsyncadd [#allocation3], 0
      %s20 = sshll.u32 %s0, 4
      %s21 = int_to_ptr.hbm [resolvable:$true] %s20
      %s22 = sshll.u32 [#allocation2], 4
      %s23 = int_to_ptr.vmem [resolvable:$true] %s22
      %28 = dma.hbm_to_vmem [thread:$0]  %s21, 256, %s23, [#allocation3], 128, 128, 8
    $region5: #{tpu_custom_call.1} parent=1 // pred_fallthru
      _
    // Predicated region
    $region6: #{tpu_custom_call.1} parent=1 // pred_check
      _
    $region7: #{tpu_custom_call.1} parent=1 // pred_check_branch
      %30 = sbr.rel (0) target = $region9
    $region8: #{tpu_custom_call.1} parent=1 // pred_region
      %32 = vsyncadd [#allocation6], 0
      %s34 = sshll.u32 %s1, 4
      %s35 = int_to_ptr.hbm [resolvable:$true] %s34
      %s36 = sshll.u32 [#allocation5], 4
      %s37 = int_to_ptr.vmem [resolvable:$true] %s36
      %39 = dma.hbm_to_vmem [thread:$0]  %s35, 16, %s37, [#allocation6]
    $region9: #{tpu_custom_call.1} parent=1 // pred_fallthru
      _
    // Predicated region
    $region10: #{tpu_custom_call.1} parent=1 // pred_check
      _
    $region11: #{tpu_custom_call.1} parent=1 // pred_check_branch
      %41 = sbr.rel (0) target = $region13
    $region12: #{tpu_custom_call.1} parent=1 // pred_region
      _
    $region13: #{tpu_custom_call.1} parent=1 // pred_fallthru
      _
    // Predicated region
    $region14: #{tpu_custom_call.1} parent=1 // pred_check
      _
    $region15: #{tpu_custom_call.1} parent=1 // pred_check_branch
      %43 = sbr.rel (0) target = $region17
    $region16: #{tpu_custom_call.1} parent=1 // pred_region
      %45 = vsyncadd [#allocation6], 0
      %s46 = sshll.u32 %s3, 4
      %s47 = int_to_ptr.hbm [resolvable:$true] %s46
      %s48 = sshll.u32 [#allocation7], 4
      %s49 = int_to_ptr.vmem [resolvable:$true] %s48
      %54 = dma.hbm_to_vmem [thread:$0]  %s47, 1024, %s49, [#allocation6], 128, 128, 8
    $region17: #{tpu_custom_call.1} parent=1 // pred_fallthru
      _
    // Predicated region
    $region18: #{tpu_custom_call.1} parent=1 // pred_check
      _
    $region19: #{tpu_custom_call.1} parent=1 // pred_check_branch
      %56 = sbr.rel (0) target = $region21
    $region20: #{tpu_custom_call.1} parent=1 // pred_region
      _
    $region21: #{tpu_custom_call.1} parent=1 // pred_fallthru
      _
    // Predicated region
    $region22: #{tpu_custom_call.1} parent=1 // pred_check
      _
    $region23: #{tpu_custom_call.1} parent=1 // pred_check_branch
      %58 = sbr.rel (0) target = $region25
    $region24: #{tpu_custom_call.1} parent=1 // pred_region
      %60 = dma.done [#allocation3], 256
    $region25: #{tpu_custom_call.1} parent=1 // pred_fallthru
      _
    // Predicated region
    $region26: #{tpu_custom_call.1} parent=1 // pred_check
      _
    $region27: #{tpu_custom_call.1} parent=1 // pred_check_branch
      %62 = sbr.rel (0) target = $region29
    $region28: #{tpu_custom_call.1} parent=1 // pred_region
      %64 = dma.done [#allocation6], 16
    $region29: #{tpu_custom_call.1} parent=1 // pred_fallthru
      _
    // Predicated region
    $region30: #{tpu_custom_call.1} parent=1 // pred_check
      _
    $region31: #{tpu_custom_call.1} parent=1 // pred_check_branch
      %66 = sbr.rel (0) target = $region33
    $region32: #{tpu_custom_call.1} parent=1 // pred_region
      %68 = dma.done [#allocation6], 1024
    $region33: #{tpu_custom_call.1} parent=1 // pred_fallthru
      _
    %v70 = vld [vmem:[#allocation2] sm:$0xff]
    %v71 = vld [vmem:[#allocation2 + $0x8] sm:$0xff]
    %vm72 = vcmask 523264
    %v73 = vsel %vm72, %v70, 0.0
    %74 = vadd.xlane.f32.xlu0 %v73
    %v75 = vpop.xlane.xlu0 %74
    %v76 = vsel %vm72, %v71, 0.0
    %77 = vadd.xlane.f32.xlu0 %v76
    %v78 = vpop.xlane.xlu0 %77
    %v79 = vrcp.pop 64.0
    %v80 = vmul.f32 64.0, %v79
    %v81 = vsub.f32 1.0, %v80
    %v82 = vmul.f32 %v79, %v81
    %v83 = vadd.f32 %v79, %v82
    %vm84 = vweird.f32 %v79
    %v85 = vsel %vm84, %v79, %v83
    %v86 = vmul.f32 %v75, %v85
    %v87 = vmul.f32 %v78, %v85
    %v88 = vsub.f32 %v70, %v86
    %v89 = vsub.f32 %v71, %v87
    %v90 = vmul.f32 %v88, %v88
    %v91 = vmul.f32 %v89, %v89
    %v92 = vsel %vm72, %v90, 0.0
    %93 = vadd.xlane.f32.xlu0 %v92
    %v94 = vpop.xlane.xlu0 %93
    %v95 = vsel %vm72, %v91, 0.0
    %96 = vadd.xlane.f32.xlu0 %v95
    %v97 = vpop.xlane.xlu0 %96
    %v98 = vmul.f32 %v94, %v85
    %v99 = vmul.f32 %v97, %v85
    %v100 = vadd.f32 %v98, 1e-05
    %v101 = vadd.f32 %v99, 1e-05
    %v102 = vrsqrt.pop %v100
    %v103 = vmul.f32 %v102, %v100
    %v104 = vmul.f32 %v103, %v102
    %v105 = vmul.f32 0.5, %v104
    %v106 = vsub.f32 1.5, %v105
    %v107 = vmul.f32 %v102, %v106
    %vm108 = vweird.f32 %v100
    %vm109 = vweird.f32 %v102
    %vm110 = vmor %vm108, %vm109
    %v111 = vsel %vm110, %v102, %v107
    %v112 = vrsqrt.pop %v101
    %v113 = vmul.f32 %v112, %v101
    %v114 = vmul.f32 %v113, %v112
    %v115 = vmul.f32 0.5, %v114
    %v116 = vsub.f32 1.5, %v115
    %v117 = vmul.f32 %v112, %v116
    %vm118 = vweird.f32 %v101
    %vm119 = vweird.f32 %v112
    %vm120 = vmor %vm118, %vm119
    %v121 = vsel %vm120, %v112, %v117
    %v122 = vmul.f32 %v88, %v111
    %v123 = vmul.f32 %v89, %v121
    %v124 = vld [vmem:[#allocation5] sm:$0x1]
    %v126 = vperm.slane %v124, 0
    %v128 = vmul.f32 %v122, %v126
    %v129 = vmul.f32 %v123, %v126
    %v130 = vld [vmem:[%s2] sm:$0x1]
    %v132 = vperm.slane %v130, 0
    %v134 = vadd.f32 %v128, %v132
    %v135 = vadd.f32 %v129, %v132
    %v136 = vmul.f32 %v134, 0.5
    %v137 = vmul.f32 %v135, 0.5
    %v138 = vmul.f32 %v134, 0.70710677
    %v139 = vmul.f32 %v135, 0.70710677
    %v140 = vmul.f32 %v138, %v138
    %v141 = vmin.f32 16.0, %v140
    %v142 = vmul.f32 %v141, 2.1237322e-06
    %v143 = vadd.f32 %v142, 0.00028619796
    %v144 = vmul.f32 %v141, %v143
    %v145 = vadd.f32 %v144, 0.0036580483
    %v146 = vmul.f32 %v141, %v145
    %v147 = vadd.f32 %v146, 0.05243302
    %v148 = vmul.f32 %v141, %v147
    %v149 = vadd.f32 %v148, 0.18741608
    %v150 = vmul.f32 %v141, %v149
    %v151 = vadd.f32 %v150, 1.1283791
    %v152 = vmul.f32 %v138, %v151
    %v153 = vmul.f32 %v141, 3.8918573e-05
    %v154 = vadd.f32 %v153, 0.001143296
    %v155 = vmul.f32 %v141, %v154
    %v156 = vadd.f32 %v155, 0.014752088
    %v157 = vmul.f32 %v141, %v156
    %v158 = vadd.f32 %v157, 0.112945676
    %v159 = vmul.f32 %v141, %v158
    %v160 = vadd.f32 %v159, 0.4994258
    %v161 = vmul.f32 %v141, %v160
    %v162 = vadd.f32 %v161, 1.0
    %v163 = vrcp.pop %v162
    %v164 = vmul.f32 %v162, %v163
    %v165 = vsub.f32 1.0, %v164
    %v166 = vmul.f32 %v163, %v165
    %v167 = vadd.f32 %v163, %v166
    %vm168 = vweird.f32 %v162
    %vm169 = vweird.f32 %v163
    %vm170 = vmor %vm168, %vm169
    %v171 = vsel %vm170, %v163, %v167
    %v172 = vand.u32 2147483647, %v162
    %vm173 = vcmp.eq.f32.partialorder %v172, 8.507059e+37
    %v174 = vand.u32 %v162, 2147483648
    %v175 = vor.u32 1.1754944e-38, %v174
    %v176 = vsel %vm173, %v175, %v171
    %v177 = vmul.f32 %v152, %v176
    %v178 = vmin.f32 %v177, 1.0
    %v179 = vmax.f32 %v178, -1.0
    %v180 = vmul.f32 %v139, %v139
    %v181 = vmin.f32 16.0, %v180
    %v182 = vmul.f32 %v181, 2.1237322e-06
    %v183 = vadd.f32 %v182, 0.00028619796
    %v184 = vmul.f32 %v181, %v183
    %v185 = vadd.f32 %v184, 0.0036580483
    %v186 = vmul.f32 %v181, %v185
    %v187 = vadd.f32 %v186, 0.05243302
    %v188 = vmul.f32 %v181, %v187
    %v189 = vadd.f32 %v188, 0.18741608
    %v190 = vmul.f32 %v181, %v189
    %v191 = vadd.f32 %v190, 1.1283791
    %v192 = vmul.f32 %v139, %v191
    %v193 = vmul.f32 %v181, 3.8918573e-05
    %v194 = vadd.f32 %v193, 0.001143296
    %v195 = vmul.f32 %v181, %v194
    %v196 = vadd.f32 %v195, 0.014752088
    %v197 = vmul.f32 %v181, %v196
    %v198 = vadd.f32 %v197, 0.112945676
    %v199 = vmul.f32 %v181, %v198
    %v200 = vadd.f32 %v199, 0.4994258
    %v201 = vmul.f32 %v181, %v200
    %v202 = vadd.f32 %v201, 1.0
    %v203 = vrcp.pop %v202
    %v204 = vmul.f32 %v202, %v203
    %v205 = vsub.f32 1.0, %v204
    %v206 = vmul.f32 %v203, %v205
    %v207 = vadd.f32 %v203, %v206
    %vm208 = vweird.f32 %v202
    %vm209 = vweird.f32 %v203
    %vm210 = vmor %vm208, %vm209
    %v211 = vsel %vm210, %v203, %v207
    %v212 = vand.u32 2147483647, %v202
    %vm213 = vcmp.eq.f32.partialorder %v212, 8.507059e+37
    %v214 = vand.u32 %v202, 2147483648
    %v215 = vor.u32 1.1754944e-38, %v214
    %v216 = vsel %vm213, %v215, %v211
    %v217 = vmul.f32 %v192, %v216
    %v218 = vmin.f32 %v217, 1.0
    %v219 = vmax.f32 %v218, -1.0
    %v220 = vadd.f32 %v179, 1.0
    %v221 = vadd.f32 %v219, 1.0
    %v222 = vmul.f32 %v136, %v220
    %v223 = vmul.f32 %v137, %v221
    %v224 = vpack.c.bf16 %v223, %v222
    %v225 = vld [vmem:[#allocation7] sm:$0xff]
    %v226 = vld [vmem:[#allocation7 + $0x8] sm:$0xff]
    %v227 = vld [vmem:[#allocation7 + $0x10] sm:$0xff]
    %v228 = vld [vmem:[#allocation7 + $0x18] sm:$0xff]
    %v229 = vld [vmem:[#allocation7 + $0x20] sm:$0xff]
    %v230 = vld [vmem:[#allocation7 + $0x28] sm:$0xff]
    %v231 = vld [vmem:[#allocation7 + $0x30] sm:$0xff]
    %v232 = vld [vmem:[#allocation7 + $0x38] sm:$0xff]
    %v233 = vld [vmem:[%s4] sm:$0x3]
    %v235 = vperm.slane %v233, 0
    %v236 = vperm.slane %v233, 1
    %v247 = vunpack.c.l.b16 %v225
    %v248 = vunpack.c.h.b16 %v225
    %v249 = vunpack.c.l.b16 %v226
    %v250 = vunpack.c.h.b16 %v226
    %v251 = vunpack.c.l.b16 %v227
    %v252 = vunpack.c.h.b16 %v227
    %v253 = vunpack.c.l.b16 %v228
    %v254 = vunpack.c.h.b16 %v228
    %v255 = vunpack.c.l.b16 %v229
    %v256 = vunpack.c.h.b16 %v229
    %v257 = vunpack.c.l.b16 %v230
    %v258 = vunpack.c.h.b16 %v230
    %v259 = vunpack.c.l.b16 %v231
    %v260 = vunpack.c.h.b16 %v231
    %v261 = vunpack.c.l.b16 %v232
    %v262 = vunpack.c.h.b16 %v232
    %v263 = vpack.c.b16 %v249, %v247
    %v264 = vpack.c.b16 %v250, %v248
    %v265 = vpack.c.b16 %v253, %v251
    %v266 = vpack.c.b16 %v254, %v252
    %v267 = vpack.c.b16 %v257, %v255
    %v268 = vpack.c.b16 %v258, %v256
    %v269 = vpack.c.b16 %v261, %v259
    %v270 = vpack.c.b16 %v262, %v260
    %v280 = vsel %vm72, %v224, 0
    %282 = vmatpush.bf16.msra.mxu0 0
    %283 = vmatpush.bf16.msra.mxu0 0
    %284 = vmatpush.bf16.msra.mxu0 0
    %285 = vmatpush.bf16.msra.mxu0 0
    %286 = vmatpush.bf16.msra.mxu0 %v269
    %287 = vmatpush.bf16.msra.mxu0 %v267
    %288 = vmatpush.bf16.msra.mxu0 %v265
    %289 = vmatpush.bf16.msra.mxu0 %v263
    %290 = vmatmul.bf16.gmra.mxu0 %v280
    %v291 = vpop.f32.mrf.mxu0
    %v292 = vadd.f32 %v235, %v291
    %v293 = vpop.f32.mrf.mxu0
    %v294 = vadd.f32 %v235, %v293
    %295 = vdwg.mxu0
    %296 = vmatpush.bf16.msra.mxu0 0
    %297 = vmatpush.bf16.msra.mxu0 0
    %298 = vmatpush.bf16.msra.mxu0 0
    %299 = vmatpush.bf16.msra.mxu0 0
    %300 = vmatpush.bf16.msra.mxu0 %v270
    %301 = vmatpush.bf16.msra.mxu0 %v268
    %302 = vmatpush.bf16.msra.mxu0 %v266
    %303 = vmatpush.bf16.msra.mxu0 %v264
    %304 = vmatmul.bf16.gmra.mxu0 %v280
    %v305 = vpop.f32.mrf.mxu0
    %v306 = vadd.f32 %v236, %v305
    %v307 = vpop.f32.mrf.mxu0
    %v308 = vadd.f32 %v236, %v307
    %309 = vdwg.mxu0
    %v310 = vpack.c.bf16 %v292, %v292
    %v311 = vpack.c.bf16 %v294, %v294
    %vm312 = vcmask 781312
    %313 = vst.msk [vmem:[#allocation8] sm:$0xf] %vm312, %v310
    %314 = vst.msk [vmem:[#allocation8 + $0x4] sm:$0xf] %vm312, %v311
    %v315 = vpack.c.bf16 %v306, %v292
    %v316 = vpack.c.bf16 %v308, %v294
    %319 = vrot.lane.b32.xlu0 %v315, 32
    %v320 = vpop.permute.xlu0 %319
    %321 = vrot.lane.b32.xlu0 %v316, 32
    %v322 = vpop.permute.xlu0 %321
    %v323 = vrot.slane %v320, 4
    %v324 = vrot.slane %v322, 4
    %vm325 = vcmask 261120
    %v326 = vsel %vm325, %v320, %v323
    %v327 = vsel %vm325, %v322, %v324
    %330 = vst.msk [vmem:[#allocation9] sm:$0xf] %vm312, %v326
    %331 = vst.msk [vmem:[#allocation9 + $0x4] sm:$0xf] %vm312, %v327
    // Predicated region
    $region34: #{tpu_custom_call.1} parent=1 // pred_check
      _
    $region35: #{tpu_custom_call.1} parent=1 // pred_check_branch
      %333 = sbr.rel (0) target = $region37
    $region36: #{tpu_custom_call.1} parent=1 // pred_region
      %335 = vsyncadd [#allocation4], 0
      %s336 = sshll.u32 [#allocation8], 4
      %s337 = int_to_ptr.vmem [resolvable:$true] %s336
      %s338 = sshll.u32 %s5, 4
      %s339 = int_to_ptr.hbm [resolvable:$true] %s338
      %344 = dma.vmem_to_hbm [thread:$0]  %s337, 128, %s339, [#allocation4], 64, 64, 4
    $region37: #{tpu_custom_call.1} parent=1 // pred_fallthru
      _
    // Predicated region
    $region38: #{tpu_custom_call.1} parent=1 // pred_check
      _
    $region39: #{tpu_custom_call.1} parent=1 // pred_check_branch
      %346 = sbr.rel (0) target = $region41
    $region40: #{tpu_custom_call.1} parent=1 // pred_region
      %348 = vsyncadd [#allocation10], 0
      %s349 = sshll.u32 [#allocation9], 4
      %s350 = int_to_ptr.vmem [resolvable:$true] %s349
      %s351 = sshll.u32 %s6, 4
      %s352 = int_to_ptr.hbm [resolvable:$true] %s351
      %357 = dma.vmem_to_hbm [thread:$0]  %s350, 128, %s352, [#allocation10], 64, 64, 4
    $region41: #{tpu_custom_call.1} parent=1 // pred_fallthru
      _
    // Predicated region
    $region42: #{tpu_custom_call.1} parent=1 // pred_check
      _
    $region43: #{tpu_custom_call.1} parent=1 // pred_check_branch
      %359 = sbr.rel (0) target = $region45
    $region44: #{tpu_custom_call.1} parent=1 // pred_region
      %361 = dma.done [#allocation4], 128
    $region45: #{tpu_custom_call.1} parent=1 // pred_fallthru
      _
    // Predicated region
    $region46: #{tpu_custom_call.1} parent=1 // pred_check
      _
    $region47: #{tpu_custom_call.1} parent=1 // pred_check_branch
      %363 = sbr.rel (0) target = $region49
    $region48: #{tpu_custom_call.1} parent=1 // pred_region
      %365 = dma.done [#allocation10], 128
    $region49: #{tpu_custom_call.1} parent=1 // pred_fallthru
      _
    %366 = vsyncpa [#allocation3], 1
    %367 = vsyncpa [#allocation6], 1
    %368 = vsyncpa [#allocation4], 1
    %369 = vsyncpa [#allocation10], 1

</llo_original>
